<compile_context>
chip_gen: v5e
topology: v5e:2x2
jax: 0.10.0
libtpu: 0.0.40
codegen_flags: <defaults>
</compile_context>

<pallas_src>
import math
from functools import partial

import jax
import jax.numpy as jnp
from jax.experimental import pallas as pl
from jax.experimental.pallas import tpu as pltpu


# ----------------------------------------------------------------------------
# Kernel: one (batch, q-tile, head-block) step; heads accumulated into scratch.
# ----------------------------------------------------------------------------
def mha_kernel(q_ref, k_ref, v_ref, wqkv_ref, bqkv_ref, wo_ref, bo_ref,
               o_ref, acc_ref, *, heads_per_block, head_dim):
    hb = pl.program_id(2)

    @pl.when(hb == 0)
    def _init():
        # Start the accumulator from the output bias (added exactly once).
        acc_ref[...] = jnp.broadcast_to(bo_ref[...], acc_ref.shape)

    x_q = q_ref[...]                       # (tq, D) bf16
    x_k = k_ref[...]                       # (S,  D) bf16
    x_v = v_ref[...]                       # (S,  D) bf16

    # Wide, lane-dense projections (N = Hb*hd), f32 MXU accumulation.
    # sm_scale is already folded into wqkv[0] / bqkv[0].
    qh = (jnp.dot(x_q, wqkv_ref[0], preferred_element_type=jnp.float32)
          + bqkv_ref[0]).astype(jnp.bfloat16)                      # (tq, Hb*hd)
    kh = (jnp.dot(x_k, wqkv_ref[1], preferred_element_type=jnp.float32)
          + bqkv_ref[1]).astype(jnp.bfloat16)                      # (S,  Hb*hd)
    vh = (jnp.dot(x_v, wqkv_ref[2], preferred_element_type=jnp.float32)
          + bqkv_ref[2]).astype(jnp.bfloat16)                      # (S,  Hb*hd)

    # Per-head scaled dot-product attention (static unrolled loop over Hb).
    head_outs = []
    for h in range(heads_per_block):
        sl = slice(h * head_dim, (h + 1) * head_dim)
        q_h = qh[:, sl]                    # (tq, hd)  (q already pre-scaled)
        k_h = kh[:, sl]                    # (S,  hd)
        v_h = vh[:, sl]                    # (S,  hd)
        s = jax.lax.dot_general(q_h, k_h, (((1,), (1,)), ((), ())),
                                preferred_element_type=jnp.float32)  # (tq, S)
        s = s - jnp.max(s, axis=-1, keepdims=True)
        p = jnp.exp(s)
        p = p * pl.reciprocal(jnp.sum(p, axis=-1, keepdims=True), approx=True)
        head_outs.append(
            jnp.dot(p.astype(jnp.bfloat16), v_h,
                    preferred_element_type=jnp.float32))             # (tq, hd)

    # combine_heads + W_o for this head block: one wide matmul, K = Hb*hd.
    attn = jnp.concatenate(head_outs, axis=-1).astype(jnp.bfloat16)  # (tq, Hb*hd)
    acc_ref[...] += jnp.dot(attn, wo_ref[...],
                            preferred_element_type=jnp.float32)      # (tq, D)

    @pl.when(hb == pl.num_programs(2) - 1)
    def _store():
        o_ref[...] = acc_ref[...].astype(o_ref.dtype)


# ----------------------------------------------------------------------------
# One-time parameter packing (head-blocked slabs, sm_scale folded into Wq/bq).
# ----------------------------------------------------------------------------
def pack_params(params, num_heads):
    D = params["wq"].shape[0]
    assert D % num_heads == 0
    hd = D // num_heads

    # Heads per block: smallest multiple-of-hd lane width >= 128 (or all heads).
    hb = min(num_heads, max(1, -(-128 // hd)))
    while num_heads % hb:
        hb -= 1
    nhb = num_heads // hb
    hbd = hb * hd
    sm_scale = 1.0 / math.sqrt(hd)

    def split_w(w):                       # (D, D) -> (nhb, D, hbd)
        return w.reshape(D, nhb, hbd).transpose(1, 0, 2)

    def split_b(b):                       # (D,) -> (nhb, 1, hbd)
        return b.reshape(nhb, 1, hbd)

    wq = split_w(params["wq"] * sm_scale)
    wk = split_w(params["wk"])
    wv = split_w(params["wv"])
    bq = split_b(params["bq"] * sm_scale)
    bk = split_b(params["bk"])
    bv = split_b(params["bv"])

    return {
        "wqkv": jnp.stack([wq, wk, wv], 0).astype(jnp.bfloat16),   # (3,nhb,D,hbd)
        "bqkv": jnp.stack([bq, bk, bv], 0).astype(jnp.float32),    # (3,nhb,1,hbd)
        "wo": params["wo"].reshape(nhb, hbd, D).astype(jnp.bfloat16),
        "bo": params["bo"].reshape(1, D).astype(jnp.float32),
        "num_heads": num_heads, "heads_per_block": hb, "head_dim": hd,
    }


def _pick_q_tile(S, max_tile=256):
    if S <= max_tile:
        return S
    for t in range(max_tile, 7, -8):
        if S % t == 0:
            return t
    return S


def _vmem_limit_bytes(S, D, tq, hbd):
    bf, f32 = 2, 4
    est = (2 * (tq * D + 2 * S * D) * bf            # double-buffered activations
           + 2 * (3 * D * hbd + hbd * D) * bf       # double-buffered weight slabs
           + 2 * (3 * hbd + D) * f32                # biases
           + 3 * tq * D * f32                       # output double-buffer + scratch
           + (tq + 2 * S) * hbd * f32               # projected q/k/v
           + 2 * tq * S * f32 + tq * D * f32)       # scores / probs / contrib
    return int(min(64 * 1024 * 1024, max(16 * 1024 * 1024, 2 * est)))


# ----------------------------------------------------------------------------
# Wrapper: single fused pallas_call.
# ----------------------------------------------------------------------------
def multi_head_attention(q, k, v, packed):
    B, S, D = q.shape
    hb_heads = packed["heads_per_block"]
    hd = packed["head_dim"]
    nhb = packed["wqkv"].shape[1]
    hbd = hb_heads * hd
    tq = _pick_q_tile(S)

    sq = pl.Squeezed()
    grid = (B, S // tq, nhb)

    q_spec = pl.BlockSpec((sq, tq, D), lambda b, qt, h: (b, qt, 0))
    kv_spec = pl.BlockSpec((sq, S, D), lambda b, qt, h: (b, 0, 0))
    wqkv_spec = pl.BlockSpec((3, sq, D, hbd), lambda b, qt, h: (0, h, 0, 0))
    bqkv_spec = pl.BlockSpec((3, sq, 1, hbd), lambda b, qt, h: (0, h, 0, 0))
    wo_spec = pl.BlockSpec((sq, hbd, D), lambda b, qt, h: (h, 0, 0))
    bo_spec = pl.BlockSpec((1, D), lambda b, qt, h: (0, 0))
    o_spec = pl.BlockSpec((sq, tq, D), lambda b, qt, h: (b, qt, 0))

    return pl.pallas_call(
        partial(mha_kernel, heads_per_block=hb_heads, head_dim=hd),
        out_shape=jax.ShapeDtypeStruct((B, S, D), jnp.float32),
        grid=grid,
        in_specs=[q_spec, kv_spec, kv_spec,
                  wqkv_spec, bqkv_spec, wo_spec, bo_spec],
        out_specs=o_spec,
        scratch_shapes=[pltpu.VMEM((tq, D), jnp.float32)],
        compiler_params=pltpu.CompilerParams(
            dimension_semantics=("parallel", "parallel", "arbitrary"),
            vmem_limit_bytes=_vmem_limit_bytes(S, D, tq, hbd)),
    )(q.astype(jnp.bfloat16), k.astype(jnp.bfloat16), v.astype(jnp.bfloat16),
      packed["wqkv"], packed["bqkv"], packed["wo"], packed["bo"])


# ----------------------------------------------------------------------------
# Pure-JAX reference (mirrors the PyTorch module, f32)
# ----------------------------------------------------------------------------
def mha_reference(q, k, v, params, *, num_heads):
    B, S, D = q.shape
    hd = D // num_heads
    proj = lambda x, w, b: jnp.einsum("bsd,de->bse", x, w) + b
    qp = proj(q, params["wq"], params["bq"])
    kp = proj(k, params["wk"], params["bk"])
    vp = proj(v, params["wv"], params["bv"])
    split = lambda x: x.reshape(B, S, num_heads, hd).transpose(0, 2, 1, 3)
    qh, kh, vh = split(qp), split(kp), split(vp)
    s = jnp.einsum("bhqd,bhkd->bhqk", qh, kh) / math.sqrt(hd)
    p = jax.nn.softmax(s, axis=-1)
    o = jnp.einsum("bhqk,bhkd->bhqd", p, vh)
    o = o.transpose(0, 2, 1, 3).reshape(B, S, D)
    return jnp.einsum("bsd,de->bse", o, params["wo"]) + params["bo"]


def init_params(key, d_model):
    # Weights stored as (d_in, d_out), i.e. PyTorch nn.Linear weight transposed.
    bound = 1.0 / math.sqrt(d_model)
    ks = jax.random.split(key, 8)
    u = lambda kk, shape: jax.random.uniform(kk, shape, jnp.float32, -bound, bound)
    return {
        "wq": u(ks[0], (d_model, d_model)), "bq": u(ks[1], (d_model,)),
        "wk": u(ks[2], (d_model, d_model)), "bk": u(ks[3], (d_model,)),
        "wv": u(ks[4], (d_model, d_model)), "bv": u(ks[5], (d_model,)),
        "wo": u(ks[6], (d_model, d_model)), "bo": u(ks[7], (d_model,)),
    }


if __name__ == "__main__":
    B, S, D, H = 2, 16, 32, 4
    key = jax.random.PRNGKey(0)
    kq, kk, kv, kp = jax.random.split(key, 4)
    q = jax.random.normal(kq, (B, S, D), dtype=jnp.float32)
    k = jax.random.normal(kk, (B, S, D), dtype=jnp.float32)
    v = jax.random.normal(kv, (B, S, D), dtype=jnp.float32)
    params = init_params(kp, D)

    packed = pack_params(params, num_heads=H)   # one-time weight packing

    out = multi_head_attention(q, k, v, packed)
    out = jax.block_until_ready(out)

    assert out.shape == (B, S, D)
    assert bool(jnp.all(jnp.isfinite(out)))
    ref = mha_reference(q, k, v, params, num_heads=H)
    # bf16 matmul operands + approx softmax reciprocal -> loose tolerance.
    assert bool(jnp.allclose(out, ref, rtol=5e-2, atol=5e-2))
    print("KERNEL_OK")
</pallas_src>

<mosaic_0001>
module attributes {stable_mosaic.version = 11 : i64} {
  func.func @mha_kernel(%arg0: i32, %arg1: i32, %arg2: i32, %arg3: memref<1x16x32xbf16, #tpu.memory_space<vmem>>, %arg4: memref<1x16x32xbf16, #tpu.memory_space<vmem>>, %arg5: memref<1x16x32xbf16, #tpu.memory_space<vmem>>, %arg6: memref<3x1x32x32xbf16, #tpu.memory_space<vmem>>, %arg7: memref<3x1x1x32xf32, #tpu.memory_space<vmem>>, %arg8: memref<1x32x32xbf16, #tpu.memory_space<vmem>>, %arg9: memref<1x32xf32, #tpu.memory_space<vmem>>, %arg10: memref<1x16x32xf32, #tpu.memory_space<vmem>>, %arg11: memref<16x32xf32, #tpu.memory_space<vmem>>) attributes {dimension_semantics = [#tpu.dimension_semantics<parallel>, #tpu.dimension_semantics<parallel>, #tpu.dimension_semantics<arbitrary>], iteration_bounds = array<i64: 2, 1, 1>, scalar_prefetch = 0 : i64, scratch_operands = 1 : i64, tpu.core_type = #tpu.core_type<tc>, window_params = [{transform_indices = @transform_0, window_bounds = array<i64: 1, 16, 32>}, {transform_indices = @transform_1, window_bounds = array<i64: 1, 16, 32>}, {transform_indices = @transform_2, window_bounds = array<i64: 1, 16, 32>}, {transform_indices = @transform_3, window_bounds = array<i64: 3, 1, 32, 32>}, {transform_indices = @transform_4, window_bounds = array<i64: 3, 1, 1, 32>}, {transform_indices = @transform_5, window_bounds = array<i64: 1, 32, 32>}, {pipeline_mode = #tpu.pipeline_mode<synchronous>, transform_indices = @transform_6, window_bounds = array<i64: 1, 32>}, {transform_indices = @transform_7, window_bounds = array<i64: 1, 16, 32>}]} {
    %c0_i32 = arith.constant 0 : i32
    %0 = arith.cmpi eq, %arg2, %c0_i32 : i32
    %1 = arith.extui %0 : i1 to i32
    %c0_i32_0 = arith.constant 0 : i32
    %2 = arith.cmpi ne, %1, %c0_i32_0 : i32
    scf.if %2 {
      %c0_59 = arith.constant 0 : index
      %c0_60 = arith.constant 0 : index
      %108 = vector.load %arg9[%c0_59, %c0_60] : memref<1x32xf32, #tpu.memory_space<vmem>>, vector<1x32xf32>
      %109 = vector.shape_cast %108 : vector<1x32xf32> to vector<1x32xf32>
      %110 = vector.broadcast %109 : vector<1x32xf32> to vector<16x32xf32>
      %c0_61 = arith.constant 0 : index
      %c0_62 = arith.constant 0 : index
      %111 = vector.load %arg11[%c0_61, %c0_62] : memref<16x32xf32, #tpu.memory_space<vmem>>, vector<16x32xf32>
      tpu.vector_store %arg11[%c0_61, %c0_62], %110 {strides = array<i32>} : memref<16x32xf32, #tpu.memory_space<vmem>>, vector<16x32xf32>,
    } else {
    }
    %c0 = arith.constant 0 : index
    %c0_1 = arith.constant 0 : index
    %c0_2 = arith.constant 0 : index
    %3 = vector.load %arg3[%c0, %c0_1, %c0_2] : memref<1x16x32xbf16, #tpu.memory_space<vmem>>, vector<1x16x32xbf16>
    %4 = vector.shape_cast %3 : vector<1x16x32xbf16> to vector<16x32xbf16>
    %c0_3 = arith.constant 0 : index
    %c0_4 = arith.constant 0 : index
    %c0_5 = arith.constant 0 : index
    %5 = vector.load %arg4[%c0_3, %c0_4, %c0_5] : memref<1x16x32xbf16, #tpu.memory_space<vmem>>, vector<1x16x32xbf16>
    %6 = vector.shape_cast %5 : vector<1x16x32xbf16> to vector<16x32xbf16>
    %c0_6 = arith.constant 0 : index
    %c0_7 = arith.constant 0 : index
    %c0_8 = arith.constant 0 : index
    %7 = vector.load %arg5[%c0_6, %c0_7, %c0_8] : memref<1x16x32xbf16, #tpu.memory_space<vmem>>, vector<1x16x32xbf16>
    %8 = vector.shape_cast %7 : vector<1x16x32xbf16> to vector<16x32xbf16>
    %c0_9 = arith.constant 0 : index
    %c0_10 = arith.constant 0 : index
    %c0_11 = arith.constant 0 : index
    %c0_12 = arith.constant 0 : index
    %9 = vector.load %arg6[%c0_9, %c0_10, %c0_11, %c0_12] : memref<3x1x32x32xbf16, #tpu.memory_space<vmem>>, vector<1x1x32x32xbf16>
    %10 = vector.shape_cast %9 : vector<1x1x32x32xbf16> to vector<32x32xbf16>
    %cst = arith.constant dense<0.000000e+00> : vector<16x32xf32>
    %11 = tpu.matmul %4, %10, %cst {dimension_numbers = #tpu.dot_dimension_numbers<[1], [0], [0], [1], [0, 0, 1, 1], [], []>} : vector<16x32xbf16>, vector<32x32xbf16>, vector<16x32xf32> -> vector<16x32xf32>
    %c0_13 = arith.constant 0 : index
    %c0_14 = arith.constant 0 : index
    %c0_15 = arith.constant 0 : index
    %c0_16 = arith.constant 0 : index
    %12 = vector.load %arg7[%c0_13, %c0_14, %c0_15, %c0_16] : memref<3x1x1x32xf32, #tpu.memory_space<vmem>>, vector<1x1x1x32xf32>
    %13 = vector.shape_cast %12 : vector<1x1x1x32xf32> to vector<1x32xf32>
    %14 = vector.broadcast %13 : vector<1x32xf32> to vector<16x32xf32>
    %15 = arith.addf %11, %14 : vector<16x32xf32>
    %16 = arith.truncf %15 : vector<16x32xf32> to vector<16x32xbf16>
    %c1 = arith.constant 1 : index
    %c0_17 = arith.constant 0 : index
    %c0_18 = arith.constant 0 : index
    %c0_19 = arith.constant 0 : index
    %17 = vector.load %arg6[%c1, %c0_17, %c0_18, %c0_19] : memref<3x1x32x32xbf16, #tpu.memory_space<vmem>>, vector<1x1x32x32xbf16>
    %18 = vector.shape_cast %17 : vector<1x1x32x32xbf16> to vector<32x32xbf16>
    %cst_20 = arith.constant dense<0.000000e+00> : vector<16x32xf32>
    %19 = tpu.matmul %6, %18, %cst_20 {dimension_numbers = #tpu.dot_dimension_numbers<[1], [0], [0], [1], [0, 0, 1, 1], [], []>} : vector<16x32xbf16>, vector<32x32xbf16>, vector<16x32xf32> -> vector<16x32xf32>
    %c1_21 = arith.constant 1 : index
    %c0_22 = arith.constant 0 : index
    %c0_23 = arith.constant 0 : index
    %c0_24 = arith.constant 0 : index
    %20 = vector.load %arg7[%c1_21, %c0_22, %c0_23, %c0_24] : memref<3x1x1x32xf32, #tpu.memory_space<vmem>>, vector<1x1x1x32xf32>
    %21 = vector.shape_cast %20 : vector<1x1x1x32xf32> to vector<1x32xf32>
    %22 = vector.broadcast %21 : vector<1x32xf32> to vector<16x32xf32>
    %23 = arith.addf %19, %22 : vector<16x32xf32>
    %24 = arith.truncf %23 : vector<16x32xf32> to vector<16x32xbf16>
    %c2 = arith.constant 2 : index
    %c0_25 = arith.constant 0 : index
    %c0_26 = arith.constant 0 : index
    %c0_27 = arith.constant 0 : index
    %25 = vector.load %arg6[%c2, %c0_25, %c0_26, %c0_27] : memref<3x1x32x32xbf16, #tpu.memory_space<vmem>>, vector<1x1x32x32xbf16>
    %26 = vector.shape_cast %25 : vector<1x1x32x32xbf16> to vector<32x32xbf16>
    %cst_28 = arith.constant dense<0.000000e+00> : vector<16x32xf32>
    %27 = tpu.matmul %8, %26, %cst_28 {dimension_numbers = #tpu.dot_dimension_numbers<[1], [0], [0], [1], [0, 0, 1, 1], [], []>} : vector<16x32xbf16>, vector<32x32xbf16>, vector<16x32xf32> -> vector<16x32xf32>
    %c2_29 = arith.constant 2 : index
    %c0_30 = arith.constant 0 : index
    %c0_31 = arith.constant 0 : index
    %c0_32 = arith.constant 0 : index
    %28 = vector.load %arg7[%c2_29, %c0_30, %c0_31, %c0_32] : memref<3x1x1x32xf32, #tpu.memory_space<vmem>>, vector<1x1x1x32xf32>
    %29 = vector.shape_cast %28 : vector<1x1x1x32xf32> to vector<1x32xf32>
    %30 = vector.broadcast %29 : vector<1x32xf32> to vector<16x32xf32>
    %31 = arith.addf %27, %30 : vector<16x32xf32>
    %32 = arith.truncf %31 : vector<16x32xf32> to vector<16x32xbf16>
    %33 = vector.extract_strided_slice %16 {offsets = [0, 0], sizes = [16, 8], strides = [1, 1]} : vector<16x32xbf16> to vector<16x8xbf16>
    %34 = vector.extract_strided_slice %24 {offsets = [0, 0], sizes = [16, 8], strides = [1, 1]} : vector<16x32xbf16> to vector<16x8xbf16>
    %35 = vector.extract_strided_slice %32 {offsets = [0, 0], sizes = [16, 8], strides = [1, 1]} : vector<16x32xbf16> to vector<16x8xbf16>
    %cst_33 = arith.constant dense<0.000000e+00> : vector<16x16xf32>
    %36 = tpu.matmul %33, %34, %cst_33 {dimension_numbers = #tpu.dot_dimension_numbers<[1], [1], [0], [0], [0, 0, 1, 0], [], []>} : vector<16x8xbf16>, vector<16x8xbf16>, vector<16x16xf32> -> vector<16x16xf32>
    %cst_34 = arith.constant dense<0xFF800000> : vector<16xf32>
    %37 = vector.multi_reduction <maximumf>, %36, %cst_34 [1] : vector<16x16xf32> to vector<16xf32>
    %38 = vector.shape_cast %37 : vector<16xf32> to vector<16x1xf32>
    %39 = vector.broadcast %38 : vector<16x1xf32> to vector<16x16xf32>
    %40 = arith.subf %36, %39 : vector<16x16xf32>
    %41 = math.exp %40 : vector<16x16xf32>
    %cst_35 = arith.constant dense<0.000000e+00> : vector<16xf32>
    %42 = vector.multi_reduction <add>, %41, %cst_35 [1] : vector<16x16xf32> to vector<16xf32>
    %43 = vector.shape_cast %42 : vector<16xf32> to vector<16x1xf32>
    %44 = tpu.reciprocal %43 {approx = true} : vector<16x1xf32> -> vector<16x1xf32>
    %45 = vector.broadcast %44 : vector<16x1xf32> to vector<16x16xf32>
    %46 = arith.mulf %41, %45 : vector<16x16xf32>
    %47 = arith.truncf %46 : vector<16x16xf32> to vector<16x16xbf16>
    %cst_36 = arith.constant dense<0.000000e+00> : vector<16x8xf32>
    %48 = tpu.matmul %47, %35, %cst_36 {dimension_numbers = #tpu.dot_dimension_numbers<[1], [0], [0], [1], [0, 0, 1, 1], [], []>} : vector<16x16xbf16>, vector<16x8xbf16>, vector<16x8xf32> -> vector<16x8xf32>
    %49 = vector.extract_strided_slice %16 {offsets = [0, 8], sizes = [16, 8], strides = [1, 1]} : vector<16x32xbf16> to vector<16x8xbf16>
    %50 = vector.extract_strided_slice %24 {offsets = [0, 8], sizes = [16, 8], strides = [1, 1]} : vector<16x32xbf16> to vector<16x8xbf16>
    %51 = vector.extract_strided_slice %32 {offsets = [0, 8], sizes = [16, 8], strides = [1, 1]} : vector<16x32xbf16> to vector<16x8xbf16>
    %cst_37 = arith.constant dense<0.000000e+00> : vector<16x16xf32>
    %52 = tpu.matmul %49, %50, %cst_37 {dimension_numbers = #tpu.dot_dimension_numbers<[1], [1], [0], [0], [0, 0, 1, 0], [], []>} : vector<16x8xbf16>, vector<16x8xbf16>, vector<16x16xf32> -> vector<16x16xf32>
    %cst_38 = arith.constant dense<0xFF800000> : vector<16xf32>
    %53 = vector.multi_reduction <maximumf>, %52, %cst_38 [1] : vector<16x16xf32> to vector<16xf32>
    %54 = vector.shape_cast %53 : vector<16xf32> to vector<16x1xf32>
    %55 = vector.broadcast %54 : vector<16x1xf32> to vector<16x16xf32>
    %56 = arith.subf %52, %55 : vector<16x16xf32>
    %57 = math.exp %56 : vector<16x16xf32>
    %cst_39 = arith.constant dense<0.000000e+00> : vector<16xf32>
    %58 = vector.multi_reduction <add>, %57, %cst_39 [1] : vector<16x16xf32> to vector<16xf32>
    %59 = vector.shape_cast %58 : vector<16xf32> to vector<16x1xf32>
    %60 = tpu.reciprocal %59 {approx = true} : vector<16x1xf32> -> vector<16x1xf32>
    %61 = vector.broadcast %60 : vector<16x1xf32> to vector<16x16xf32>
    %62 = arith.mulf %57, %61 : vector<16x16xf32>
    %63 = arith.truncf %62 : vector<16x16xf32> to vector<16x16xbf16>
    %cst_40 = arith.constant dense<0.000000e+00> : vector<16x8xf32>
    %64 = tpu.matmul %63, %51, %cst_40 {dimension_numbers = #tpu.dot_dimension_numbers<[1], [0], [0], [1], [0, 0, 1, 1], [], []>} : vector<16x16xbf16>, vector<16x8xbf16>, vector<16x8xf32> -> vector<16x8xf32>
    %65 = vector.extract_strided_slice %16 {offsets = [0, 16], sizes = [16, 8], strides = [1, 1]} : vector<16x32xbf16> to vector<16x8xbf16>
    %66 = vector.extract_strided_slice %24 {offsets = [0, 16], sizes = [16, 8], strides = [1, 1]} : vector<16x32xbf16> to vector<16x8xbf16>
    %67 = vector.extract_strided_slice %32 {offsets = [0, 16], sizes = [16, 8], strides = [1, 1]} : vector<16x32xbf16> to vector<16x8xbf16>
    %cst_41 = arith.constant dense<0.000000e+00> : vector<16x16xf32>
    %68 = tpu.matmul %65, %66, %cst_41 {dimension_numbers = #tpu.dot_dimension_numbers<[1], [1], [0], [0], [0, 0, 1, 0], [], []>} : vector<16x8xbf16>, vector<16x8xbf16>, vector<16x16xf32> -> vector<16x16xf32>
    %cst_42 = arith.constant dense<0xFF800000> : vector<16xf32>
    %69 = vector.multi_reduction <maximumf>, %68, %cst_42 [1] : vector<16x16xf32> to vector<16xf32>
    %70 = vector.shape_cast %69 : vector<16xf32> to vector<16x1xf32>
    %71 = vector.broadcast %70 : vector<16x1xf32> to vector<16x16xf32>
    %72 = arith.subf %68, %71 : vector<16x16xf32>
    %73 = math.exp %72 : vector<16x16xf32>
    %cst_43 = arith.constant dense<0.000000e+00> : vector<16xf32>
    %74 = vector.multi_reduction <add>, %73, %cst_43 [1] : vector<16x16xf32> to vector<16xf32>
    %75 = vector.shape_cast %74 : vector<16xf32> to vector<16x1xf32>
    %76 = tpu.reciprocal %75 {approx = true} : vector<16x1xf32> -> vector<16x1xf32>
    %77 = vector.broadcast %76 : vector<16x1xf32> to vector<16x16xf32>
    %78 = arith.mulf %73, %77 : vector<16x16xf32>
    %79 = arith.truncf %78 : vector<16x16xf32> to vector<16x16xbf16>
    %cst_44 = arith.constant dense<0.000000e+00> : vector<16x8xf32>
    %80 = tpu.matmul %79, %67, %cst_44 {dimension_numbers = #tpu.dot_dimension_numbers<[1], [0], [0], [1], [0, 0, 1, 1], [], []>} : vector<16x16xbf16>, vector<16x8xbf16>, vector<16x8xf32> -> vector<16x8xf32>
    %81 = vector.extract_strided_slice %16 {offsets = [0, 24], sizes = [16, 8], strides = [1, 1]} : vector<16x32xbf16> to vector<16x8xbf16>
    %82 = vector.extract_strided_slice %24 {offsets = [0, 24], sizes = [16, 8], strides = [1, 1]} : vector<16x32xbf16> to vector<16x8xbf16>
    %83 = vector.extract_strided_slice %32 {offsets = [0, 24], sizes = [16, 8], strides = [1, 1]} : vector<16x32xbf16> to vector<16x8xbf16>
    %cst_45 = arith.constant dense<0.000000e+00> : vector<16x16xf32>
    %84 = tpu.matmul %81, %82, %cst_45 {dimension_numbers = #tpu.dot_dimension_numbers<[1], [1], [0], [0], [0, 0, 1, 0], [], []>} : vector<16x8xbf16>, vector<16x8xbf16>, vector<16x16xf32> -> vector<16x16xf32>
    %cst_46 = arith.constant dense<0xFF800000> : vector<16xf32>
    %85 = vector.multi_reduction <maximumf>, %84, %cst_46 [1] : vector<16x16xf32> to vector<16xf32>
    %86 = vector.shape_cast %85 : vector<16xf32> to vector<16x1xf32>
    %87 = vector.broadcast %86 : vector<16x1xf32> to vector<16x16xf32>
    %88 = arith.subf %84, %87 : vector<16x16xf32>
    %89 = math.exp %88 : vector<16x16xf32>
    %cst_47 = arith.constant dense<0.000000e+00> : vector<16xf32>
    %90 = vector.multi_reduction <add>, %89, %cst_47 [1] : vector<16x16xf32> to vector<16xf32>
    %91 = vector.shape_cast %90 : vector<16xf32> to vector<16x1xf32>
    %92 = tpu.reciprocal %91 {approx = true} : vector<16x1xf32> -> vector<16x1xf32>
    %93 = vector.broadcast %92 : vector<16x1xf32> to vector<16x16xf32>
    %94 = arith.mulf %89, %93 : vector<16x16xf32>
    %95 = arith.truncf %94 : vector<16x16xf32> to vector<16x16xbf16>
    %cst_48 = arith.constant dense<0.000000e+00> : vector<16x8xf32>
    %96 = tpu.matmul %95, %83, %cst_48 {dimension_numbers = #tpu.dot_dimension_numbers<[1], [0], [0], [1], [0, 0, 1, 1], [], []>} : vector<16x16xbf16>, vector<16x8xbf16>, vector<16x8xf32> -> vector<16x8xf32>
    %97 = tpu.concatenate %48, %64, %80, %96 in 1 : vector<16x8xf32>, vector<16x8xf32>, vector<16x8xf32>, vector<16x8xf32> -> vector<16x32xf32>
    %98 = arith.truncf %97 : vector<16x32xf32> to vector<16x32xbf16>
    %c0_49 = arith.constant 0 : index
    %c0_50 = arith.constant 0 : index
    %99 = vector.load %arg11[%c0_49, %c0_50] : memref<16x32xf32, #tpu.memory_space<vmem>>, vector<16x32xf32>
    %c0_51 = arith.constant 0 : index
    %c0_52 = arith.constant 0 : index
    %c0_53 = arith.constant 0 : index
    %100 = vector.load %arg8[%c0_51, %c0_52, %c0_53] : memref<1x32x32xbf16, #tpu.memory_space<vmem>>, vector<1x32x32xbf16>
    %101 = vector.shape_cast %100 : vector<1x32x32xbf16> to vector<32x32xbf16>
    %cst_54 = arith.constant dense<0.000000e+00> : vector<16x32xf32>
    %102 = tpu.matmul %98, %101, %cst_54 {dimension_numbers = #tpu.dot_dimension_numbers<[1], [0], [0], [1], [0, 0, 1, 1], [], []>} : vector<16x32xbf16>, vector<32x32xbf16>, vector<16x32xf32> -> vector<16x32xf32>
    %103 = arith.addf %99, %102 : vector<16x32xf32>
    %c0_55 = arith.constant 0 : index
    %c0_56 = arith.constant 0 : index
    %104 = vector.load %arg11[%c0_55, %c0_56] : memref<16x32xf32, #tpu.memory_space<vmem>>, vector<16x32xf32>
    tpu.vector_store %arg11[%c0_55, %c0_56], %103 {strides = array<i32>} : memref<16x32xf32, #tpu.memory_space<vmem>>, vector<16x32xf32>,
    %c0_i32_57 = arith.constant 0 : i32
    %105 = arith.cmpi eq, %arg2, %c0_i32_57 : i32
    %106 = arith.extui %105 : i1 to i32
    %c0_i32_58 = arith.constant 0 : i32
    %107 = arith.cmpi ne, %106, %c0_i32_58 : i32
    scf.if %107 {
      %c0_59 = arith.constant 0 : index
      %c0_60 = arith.constant 0 : index
      %108 = vector.load %arg11[%c0_59, %c0_60] : memref<16x32xf32, #tpu.memory_space<vmem>>, vector<16x32xf32>
      %c0_61 = arith.constant 0 : index
      %c0_62 = arith.constant 0 : index
      %c0_63 = arith.constant 0 : index
      %109 = vector.load %arg10[%c0_61, %c0_62, %c0_63] : memref<1x16x32xf32, #tpu.memory_space<vmem>>, vector<1x16x32xf32>
      %110 = vector.shape_cast %109 : vector<1x16x32xf32> to vector<16x32xf32>
      %111 = vector.shape_cast %108 : vector<16x32xf32> to vector<1x16x32xf32>
      tpu.vector_store %arg10[%c0_61, %c0_62, %c0_63], %111 {strides = array<i32>} : memref<1x16x32xf32, #tpu.memory_space<vmem>>, vector<1x16x32xf32>,
    } else {
    }
    return
  }
  func.func @transform_0(%arg0: i32, %arg1: i32, %arg2: i32) -> (i32, i32, i32) {
    %c0_i32 = arith.constant 0 : i32
    %c0_i32_0 = arith.constant 0 : i32
    return %arg0, %arg1, %c0_i32 : i32, i32, i32
  }
  func.func @transform_1(%arg0: i32, %arg1: i32, %arg2: i32) -> (i32, i32, i32) {
    %c0_i32 = arith.constant 0 : i32
    %c0_i32_0 = arith.constant 0 : i32
    %c0_i32_1 = arith.constant 0 : i32
    return %arg0, %c0_i32, %c0_i32_0 : i32, i32, i32
  }
  func.func @transform_2(%arg0: i32, %arg1: i32, %arg2: i32) -> (i32, i32, i32) {
    %c0_i32 = arith.constant 0 : i32
    %c0_i32_0 = arith.constant 0 : i32
    %c0_i32_1 = arith.constant 0 : i32
    return %arg0, %c0_i32, %c0_i32_0 : i32, i32, i32
  }
  func.func @transform_3(%arg0: i32, %arg1: i32, %arg2: i32) -> (i32, i32, i32, i32) {
    %c0_i32 = arith.constant 0 : i32
    %c0_i32_0 = arith.constant 0 : i32
    %c0_i32_1 = arith.constant 0 : i32
    %c0_i32_2 = arith.constant 0 : i32
    return %c0_i32, %arg2, %c0_i32_0, %c0_i32_1 : i32, i32, i32, i32
  }
  func.func @transform_4(%arg0: i32, %arg1: i32, %arg2: i32) -> (i32, i32, i32, i32) {
    %c0_i32 = arith.constant 0 : i32
    %c0_i32_0 = arith.constant 0 : i32
    %c0_i32_1 = arith.constant 0 : i32
    %c0_i32_2 = arith.constant 0 : i32
    return %c0_i32, %arg2, %c0_i32_0, %c0_i32_1 : i32, i32, i32, i32
  }
  func.func @transform_5(%arg0: i32, %arg1: i32, %arg2: i32) -> (i32, i32, i32) {
    %c0_i32 = arith.constant 0 : i32
    %c0_i32_0 = arith.constant 0 : i32
    %c0_i32_1 = arith.constant 0 : i32
    return %arg2, %c0_i32, %c0_i32_0 : i32, i32, i32
  }
  func.func @transform_6(%arg0: i32, %arg1: i32, %arg2: i32) -> (i32, i32) {
    %c0_i32 = arith.constant 0 : i32
    %c0_i32_0 = arith.constant 0 : i32
    %c0_i32_1 = arith.constant 0 : i32
    return %c0_i32, %c0_i32_0 : i32, i32
  }
  func.func @transform_7(%arg0: i32, %arg1: i32, %arg2: i32) -> (i32, i32, i32) {
    %c0_i32 = arith.constant 0 : i32
    %c0_i32_0 = arith.constant 0 : i32
    return %arg0, %arg1, %c0_i32 : i32, i32, i32
  }
}

</mosaic_0001>

<llo_original>
// kernel: tpu_custom_call.1
$region0: #{tpu_custom_call.1}
  #allocation0 [shape = 'u32[]', space=smem, size = 0x4, offset = 0x4, fixed_abs, tag = 'smem constant byte address 0x4 - core index']
  #allocation1 [shape = 'u32[72,128]{1,0:T(1,128)}', space=vmem, size = 0x9000, scoped, tag = 'internal scratch']
  #allocation2 [shape = 'f32[16,32]{1,0:T(8,128)}', space=vmem, size = 0x2000, scoped, tag = 'scratch operand']
  %s0 = inlined_call_operand.hbm [shape: bf16[2,16,32], index: 0, kind: input, shape index: {}]
  %s1 = inlined_call_operand.hbm [shape: bf16[2,16,32], index: 1, kind: input, shape index: {}]
  %s2 = inlined_call_operand.hbm [shape: bf16[2,16,32], index: 2, kind: input, shape index: {}]
  %s3 = inlined_call_operand.hbm [shape: bf16[3,1,32,32], index: 3, kind: input, shape index: {}]
  %s4 = inlined_call_operand.vmem [shape: f32[3,1,1,32], index: 4, kind: input, shape index: {}]
  %s5 = inlined_call_operand.hbm [shape: bf16[1,32,32], index: 5, kind: input, shape index: {}]
  %s6 = inlined_call_operand.vmem [shape: f32[1,32], index: 6, kind: input, shape index: {}]
  %s7 = inlined_call_operand.hbm [shape: f32[2,16,32], index: 7, kind: output, shape index: {}]
  %s8 = sld [smem:[#allocation0]]
  $region89: #{tpu_custom_call.1} parent=0
    _
  %s10 = ssub.s32 1, %s8
  %s11 = scalar_select 0, %s10, %s8
  $region1: #{tpu_custom_call.1} parent=0
    #allocation3 [shape = 'u8[8192]{0}', space=vmem, size = 0x2000, scoped, tag = 'input window, operand 0']
    #allocation4 [shape = 's32[2]{0}', space=sflag, size = 0x8, scoped, tag = 'scoped memory for tpu_custom_call.1']
    #allocation5 [shape = 's32[2]{0}', space=sflag, size = 0x8, scoped, tag = 'scoped memory for tpu_custom_call.1']
    #allocation6 [shape = 'u8[8192]{0}', space=vmem, size = 0x2000, scoped, tag = 'input window, operand 1']
    #allocation7 [shape = 's32[2]{0}', space=sflag, size = 0x8, scoped, tag = 'scoped memory for tpu_custom_call.1']
    #allocation8 [shape = 'u8[8192]{0}', space=vmem, size = 0x2000, scoped, tag = 'input window, operand 2']
    #allocation9 [shape = 'u8[24576]{0}', space=vmem, size = 0x6000, scoped, tag = 'input window, operand 3, single buffered']
    #allocation10 [shape = 's32[1]{0}', space=sflag, size = 0x4, scoped, tag = 'scoped memory for tpu_custom_call.1']
    #allocation11 [shape = 'u8[8192]{0}', space=vmem, size = 0x2000, scoped, tag = 'input window, operand 5, single buffered']
    #allocation12 [shape = 'u8[16384]{0}', space=vmem, size = 0x4000, scoped, tag = 'output window, operand 0']
    %12 = vsyncpa [#allocation4], 0
    %s13 = scalar_lea.sflag [#allocation4], 1
    %14 = vsyncpa %s13, 0
    %15 = vsyncpa [#allocation7], 0
    %s16 = scalar_lea.sflag [#allocation7], 1
    %17 = vsyncpa %s16, 0
    %18 = vsyncpa [#allocation10], 0
    %19 = vsyncpa [#allocation5], 0
    %s20 = scalar_lea.sflag [#allocation5], 1
    %21 = vsyncpa %s20, 0
    loop: start=0, step=1, limit=4
    $region2: #{tpu_custom_call.1} parent=1 // loop_pre_header
      _
    $region3: #{tpu_custom_call.1} parent=1 // loop_header
      %s23 = sphi 0, %s27
      %p24 = scmp.ge.s32.totalorder %s23, 4
      %s30 = sphi 0, %s49
      %s31 = sphi 0, %s45
      %s32 = sphi 0, %s41
      %s33 = sphi 0, %s30
      %s34 = sphi 0, %s31
      %s35 = sphi 0, %s32
      %s36 = sphi 0, %s33
      %s37 = sphi 0, %s34
      %s38 = sphi 0, %s35
      %s54 = sphi 0, %s56
      %s57 = sphi 0, %s54
      %s58 = sphi 0, %s57
      %s74 = sphi 0, %s58
      %s80 = sphi 0, %s82
      %s83 = sphi 0, %s80
      %s84 = sphi 0, %s83
      %s100 = sphi 0, %s84
      %s106 = sphi 0, %s108
      %s109 = sphi 0, %s106
      %s110 = sphi 0, %s109
      %s126 = sphi 0, %s110
      %s132 = sphi 0, %s134
      %s135 = sphi 0, %s132
      %s136 = sphi 0, %s135
      %s152 = sphi 0, %s136
      %s158 = sphi 0, %s160
      %s161 = sphi 0, %s158
      %s162 = sphi 0, %s161
      %s178 = sphi 0, %s162
      %s184 = sphi 0, %s186
      %s187 = sphi 0, %s184
      %s188 = sphi 0, %s187
      %s204 = sphi 0, %s188
      %s208 = sphi 0, %s208
      %s210 = sphi 0, %s208
      %s211 = sphi 0, %s210
      %s225 = sphi 0, %s211
      %s233 = sphi 0, %s235
      %s236 = sphi 0, %s233
      %s237 = sphi 0, %s236
      %s253 = sphi 0, %s237
    $region4: #{tpu_custom_call.1} parent=1 // loop_header_branch
      %26 = sbr.rel (%p24) target = $region8
    $region5: #{tpu_custom_call.1} parent=1 // loop_body
      %s28 = ssub.s32 %s23, 1
      %s29 = ssub.s32 %s23, 2
      %s39 = sadd.s32 1, %s32
      %p40 = scmp.ge.s32.totalorder %s39, 1
      %s41 = scalar_select %p40, 0, %s39
      %s42 = sadd.s32 1, %s31
      %s43 = scalar_select %p40, %s42, %s31
      %p44 = scmp.ge.s32.totalorder %s43, 1
      %s45 = scalar_select %p44, 0, %s43
      %s46 = sadd.s32 1, %s30
      %s47 = scalar_select %p44, %s46, %s30
      %p48 = scmp.ge.s32.totalorder %s47, 2
      %s49 = scalar_select %p48, 0, %s47
      %s50 = ssub.s32 %s30, %s49
      %s51 = ssub.s32 %s31, %s45
      %s52 = sor.u32 %s50, %s51
      %p53 = scmp.eq.s32.totalorder %s52, 0
      %s55 = sadd.s32 %s54, 1
      %s56 = scalar_select %p53, %s54, %s55
      %p59 = pneg %p53
      %p60 = scmp.eq.s32.totalorder %s23, 1
      %p61 = por %p59, %p60
      %p62 = scmp.ne.s32.totalorder %s54, %s57
      %p63 = scmp.eq.s32.totalorder %s23, 0
      %p64 = por %p62, %p63
      %p65 = scmp.ne.s32.totalorder %s54, %s57
      %p66 = scmp.eq.s32.totalorder %s28, 1
      %p67 = por %p65, %p66
      %p68 = scmp.ne.s32.totalorder %s57, %s58
      %p69 = scmp.eq.s32.totalorder %s28, 0
      %p70 = por %p68, %p69
      %p71 = scmp.ne.s32.totalorder %s57, %s58
      %p72 = scmp.eq.s32.totalorder %s29, 1
      %p73 = por %p71, %p72
      %p75 = scmp.ne.s32.totalorder %s58, %s74
      %p76 = scmp.eq.s32.totalorder %s29, 0
      %p77 = por %p75, %p76
      %s78 = ssub.s32 %s30, %s49
      %p79 = scmp.eq.s32.totalorder %s78, 0
      %s81 = sadd.s32 %s80, 1
      %s82 = scalar_select %p79, %s80, %s81
      %p85 = pneg %p79
      %p86 = scmp.eq.s32.totalorder %s23, 1
      %p87 = por %p85, %p86
      %p88 = scmp.ne.s32.totalorder %s80, %s83
      %p89 = scmp.eq.s32.totalorder %s23, 0
      %p90 = por %p88, %p89
      %p91 = scmp.ne.s32.totalorder %s80, %s83
      %p92 = scmp.eq.s32.totalorder %s28, 1
      %p93 = por %p91, %p92
      %p94 = scmp.ne.s32.totalorder %s83, %s84
      %p95 = scmp.eq.s32.totalorder %s28, 0
      %p96 = por %p94, %p95
      %p97 = scmp.ne.s32.totalorder %s83, %s84
      %p98 = scmp.eq.s32.totalorder %s29, 1
      %p99 = por %p97, %p98
      %p101 = scmp.ne.s32.totalorder %s84, %s100
      %p102 = scmp.eq.s32.totalorder %s29, 0
      %p103 = por %p101, %p102
      %s104 = ssub.s32 %s30, %s49
      %p105 = scmp.eq.s32.totalorder %s104, 0
      %s107 = sadd.s32 %s106, 1
      %s108 = scalar_select %p105, %s106, %s107
      %p111 = pneg %p105
      %p112 = scmp.eq.s32.totalorder %s23, 1
      %p113 = por %p111, %p112
      %p114 = scmp.ne.s32.totalorder %s106, %s109
      %p115 = scmp.eq.s32.totalorder %s23, 0
      %p116 = por %p114, %p115
      %p117 = scmp.ne.s32.totalorder %s106, %s109
      %p118 = scmp.eq.s32.totalorder %s28, 1
      %p119 = por %p117, %p118
      %p120 = scmp.ne.s32.totalorder %s109, %s110
      %p121 = scmp.eq.s32.totalorder %s28, 0
      %p122 = por %p120, %p121
      %p123 = scmp.ne.s32.totalorder %s109, %s110
      %p124 = scmp.eq.s32.totalorder %s29, 1
      %p125 = por %p123, %p124
      %p127 = scmp.ne.s32.totalorder %s110, %s126
      %p128 = scmp.eq.s32.totalorder %s29, 0
      %p129 = por %p127, %p128
      %s130 = ssub.s32 %s32, %s41
      %p131 = scmp.eq.s32.totalorder %s130, 0
      %s133 = sadd.s32 %s132, 1
      %s134 = scalar_select %p131, %s132, %s133
      %p137 = pneg %p131
      %p138 = scmp.eq.s32.totalorder %s23, 1
      %p139 = por %p137, %p138
      %p140 = scmp.ne.s32.totalorder %s132, %s135
      %p141 = scmp.eq.s32.totalorder %s23, 0
      %p142 = por %p140, %p141
      %p143 = scmp.ne.s32.totalorder %s132, %s135
      %p144 = scmp.eq.s32.totalorder %s28, 1
      %p145 = por %p143, %p144
      %p146 = scmp.ne.s32.totalorder %s135, %s136
      %p147 = scmp.eq.s32.totalorder %s28, 0
      %p148 = por %p146, %p147
      %p149 = scmp.ne.s32.totalorder %s135, %s136
      %p150 = scmp.eq.s32.totalorder %s29, 1
      %p151 = por %p149, %p150
      %p153 = scmp.ne.s32.totalorder %s136, %s152
      %p154 = scmp.eq.s32.totalorder %s29, 0
      %p155 = por %p153, %p154
      %s156 = ssub.s32 %s32, %s41
      %p157 = scmp.eq.s32.totalorder %s156, 0
      %s159 = sadd.s32 %s158, 1
      %s160 = scalar_select %p157, %s158, %s159
      %p163 = pneg %p157
      %p164 = scmp.eq.s32.totalorder %s23, 1
      %p165 = por %p163, %p164
      %p166 = scmp.ne.s32.totalorder %s158, %s161
      %p167 = scmp.eq.s32.totalorder %s23, 0
      %p168 = por %p166, %p167
      %p169 = scmp.ne.s32.totalorder %s158, %s161
      %p170 = scmp.eq.s32.totalorder %s28, 1
      %p171 = por %p169, %p170
      %p172 = scmp.ne.s32.totalorder %s161, %s162
      %p173 = scmp.eq.s32.totalorder %s28, 0
      %p174 = por %p172, %p173
      %p175 = scmp.ne.s32.totalorder %s161, %s162
      %p176 = scmp.eq.s32.totalorder %s29, 1
      %p177 = por %p175, %p176
      %p179 = scmp.ne.s32.totalorder %s162, %s178
      %p180 = scmp.eq.s32.totalorder %s29, 0
      %p181 = por %p179, %p180
      %s182 = ssub.s32 %s32, %s41
      %p183 = scmp.eq.s32.totalorder %s182, 0
      %s185 = sadd.s32 %s184, 1
      %s186 = scalar_select %p183, %s184, %s185
      %p189 = pneg %p183
      %p190 = scmp.eq.s32.totalorder %s23, 1
      %p191 = por %p189, %p190
      %p192 = scmp.ne.s32.totalorder %s184, %s187
      %p193 = scmp.eq.s32.totalorder %s23, 0
      %p194 = por %p192, %p193
      %p195 = scmp.ne.s32.totalorder %s184, %s187
      %p196 = scmp.eq.s32.totalorder %s28, 1
      %p197 = por %p195, %p196
      %p198 = scmp.ne.s32.totalorder %s187, %s188
      %p199 = scmp.eq.s32.totalorder %s28, 0
      %p200 = por %p198, %p199
      %p201 = scmp.ne.s32.totalorder %s187, %s188
      %p202 = scmp.eq.s32.totalorder %s29, 1
      %p203 = por %p201, %p202
      %p205 = scmp.ne.s32.totalorder %s188, %s204
      %p206 = scmp.eq.s32.totalorder %s29, 0
      %p207 = por %p205, %p206
      %s209 = sadd.s32 %s208, 1
      %p212 = scmp.eq.s32.totalorder %s23, 1
      %p213 = scmp.ne.s32.totalorder %s208, %s210
      %p214 = scmp.eq.s32.totalorder %s23, 0
      %p215 = por %p213, %p214
      %p216 = scmp.ne.s32.totalorder %s208, %s210
      %p217 = scmp.eq.s32.totalorder %s28, 1
      %p218 = por %p216, %p217
      %p219 = scmp.ne.s32.totalorder %s210, %s211
      %p220 = scmp.eq.s32.totalorder %s28, 0
      %p221 = por %p219, %p220
      %p222 = scmp.ne.s32.totalorder %s210, %s211
      %p223 = scmp.eq.s32.totalorder %s29, 1
      %p224 = por %p222, %p223
      %p226 = scmp.ne.s32.totalorder %s211, %s225
      %p227 = scmp.eq.s32.totalorder %s29, 0
      %p228 = por %p226, %p227
      %s229 = ssub.s32 %s30, %s49
      %s230 = ssub.s32 %s31, %s45
      %s231 = sor.u32 %s229, %s230
      %p232 = scmp.eq.s32.totalorder %s231, 0
      %s234 = sadd.s32 %s233, 1
      %s235 = scalar_select %p232, %s233, %s234
      %p238 = pneg %p232
      %p239 = scmp.eq.s32.totalorder %s23, 1
      %p240 = por %p238, %p239
      %p241 = scmp.ne.s32.totalorder %s233, %s236
      %p242 = scmp.eq.s32.totalorder %s23, 0
      %p243 = por %p241, %p242
      %p244 = scmp.ne.s32.totalorder %s233, %s236
      %p245 = scmp.eq.s32.totalorder %s28, 1
      %p246 = por %p244, %p245
      %p247 = scmp.ne.s32.totalorder %s236, %s237
      %p248 = scmp.eq.s32.totalorder %s28, 0
      %p249 = por %p247, %p248
      %p250 = scmp.ne.s32.totalorder %s236, %s237
      %p251 = scmp.eq.s32.totalorder %s29, 1
      %p252 = por %p250, %p251
      %p254 = scmp.ne.s32.totalorder %s237, %s253
      %p255 = scmp.eq.s32.totalorder %s29, 0
      %p256 = por %p254, %p255
      %p257 = scmp.le.s32.totalorder 1, %s23
      %p258 = scmp.lt.s32.totalorder %s23, 3
      %p259 = pnand %p257, %p258
      %p260 = pneg %p259
      // Predicated region
      $region9: #{tpu_custom_call.1} parent=5 // pred_check
        _
      $region10: #{tpu_custom_call.1} parent=5 // pred_check_branch
        %262 = sbr.rel (%p259) target = $region12
      $region11: #{tpu_custom_call.1} parent=5 // pred_region
        %s263 = ssub.s32 %s23, 1
        // Predicated region
        $region13: #{tpu_custom_call.1} parent=11 // pred_check
          %p264 = pneg %p148
        $region14: #{tpu_custom_call.1} parent=11 // pred_check_branch
          %266 = sbr.rel (%p264) target = $region16
        $region15: #{tpu_custom_call.1} parent=11 // pred_region
          %268 = vsyncadd [#allocation10], 0
          %s269 = smul.addr %s35, 4
          %s270 = smul.addr %s269, 4
          %s271 = scalar_lea.hbm %s3, %s270
          %s272 = sshll.u32 %s271, 4
          %s273 = int_to_ptr.hbm [resolvable:$true] %s272
          %s274 = sshll.u32 [#allocation9], 4
          %s275 = int_to_ptr.vmem [resolvable:$true] %s274
          %280 = dma.hbm_to_vmem [thread:$0]  %s273, 768, %s275, [#allocation10], 64, 64, 4
        $region16: #{tpu_custom_call.1} parent=11 // pred_fallthru
          _
        // Predicated region
        $region17: #{tpu_custom_call.1} parent=11 // pred_check
          %p281 = pneg %p174
        $region18: #{tpu_custom_call.1} parent=11 // pred_check_branch
          %283 = sbr.rel (%p281) target = $region20
        $region19: #{tpu_custom_call.1} parent=11 // pred_region
          %p284 = scmp.lt.s32.totalorder %s35, 0
          %s285 = scalar_select %p284, %s35, 0
          %s286 = scalar_lea.vmem %s4, %s285
        $region20: #{tpu_custom_call.1} parent=11 // pred_fallthru
          _
        // Predicated region
        $region21: #{tpu_custom_call.1} parent=11 // pred_check
          %p287 = pneg %p200
        $region22: #{tpu_custom_call.1} parent=11 // pred_check_branch
          %289 = sbr.rel (%p287) target = $region24
        $region23: #{tpu_custom_call.1} parent=11 // pred_region
          %291 = vsyncadd [#allocation10], 0
          %s292 = smul.addr %s35, 4
          %s293 = smul.addr %s292, 4
          %s294 = scalar_lea.hbm %s5, %s293
          %s295 = sshll.u32 %s294, 4
          %s296 = int_to_ptr.hbm [resolvable:$true] %s295
          %s297 = sshll.u32 [#allocation11], 4
          %s298 = int_to_ptr.vmem [resolvable:$true] %s297
          %303 = dma.hbm_to_vmem [thread:$0]  %s296, 256, %s298, [#allocation10], 64, 64, 4
        $region24: #{tpu_custom_call.1} parent=11 // pred_fallthru
          _
        // Predicated region
        $region25: #{tpu_custom_call.1} parent=11 // pred_check
          %p304 = pneg %p221
        $region26: #{tpu_custom_call.1} parent=11 // pred_check_branch
          %306 = sbr.rel (%p304) target = $region28
        $region27: #{tpu_custom_call.1} parent=11 // pred_region
          _
        $region28: #{tpu_custom_call.1} parent=11 // pred_fallthru
          _
      $region12: #{tpu_custom_call.1} parent=5 // pred_fallthru
        _
      %p307 = scmp.lt.s32.totalorder %s23, 2
      // Predicated region
      $region29: #{tpu_custom_call.1} parent=5 // pred_check
        %p308 = pneg %p307
      $region30: #{tpu_custom_call.1} parent=5 // pred_check_branch
        %310 = sbr.rel (%p308) target = $region32
      $region31: #{tpu_custom_call.1} parent=5 // pred_region
        // Predicated region
        $region33: #{tpu_custom_call.1} parent=31 // pred_check
          %p311 = pneg %p64
        $region34: #{tpu_custom_call.1} parent=31 // pred_check_branch
          %313 = sbr.rel (%p311) target = $region36
        $region35: #{tpu_custom_call.1} parent=31 // pred_region
          %s314 = sand.u32 %s54, 1
          %s315 = scalar_lea.sflag [#allocation4], %s314
          %s316 = sand.u32 %s54, 1
          %s317 = smul.addr %s316, 8
          %s318 = scalar_lea.vmem [#allocation3], %s317
          %s319 = smul.u32 2, %s31
          %321 = vsyncadd %s315, 0
          %s322 = smul.addr %s30, 2
          %s323 = sadd.s32 %s319, %s322
          %s324 = smul.addr %s323, 4
          %s325 = scalar_lea.hbm %s0, %s324
          %s326 = sshll.u32 %s325, 4
          %s327 = int_to_ptr.hbm [resolvable:$true] %s326
          %s328 = sshll.u32 %s318, 4
          %s329 = int_to_ptr.vmem [resolvable:$true] %s328
          %334 = dma.hbm_to_vmem [thread:$0]  %s327, 128, %s329, %s315, 64, 64, 4
        $region36: #{tpu_custom_call.1} parent=31 // pred_fallthru
          _
        // Predicated region
        $region37: #{tpu_custom_call.1} parent=31 // pred_check
          %p335 = pneg %p90
        $region38: #{tpu_custom_call.1} parent=31 // pred_check_branch
          %337 = sbr.rel (%p335) target = $region40
        $region39: #{tpu_custom_call.1} parent=31 // pred_region
          %s338 = sand.u32 %s23, 1
          %s339 = scalar_lea.sflag [#allocation7], %s338
          %s340 = sand.u32 %s80, 1
          %s341 = smul.addr %s340, 8
          %s342 = scalar_lea.vmem [#allocation6], %s341
          %344 = vsyncadd %s339, 0
          %s345 = smul.addr %s30, 2
          %s346 = smul.addr %s345, 4
          %s347 = scalar_lea.hbm %s1, %s346
          %s348 = sshll.u32 %s347, 4
          %s349 = int_to_ptr.hbm [resolvable:$true] %s348
          %s350 = sshll.u32 %s342, 4
          %s351 = int_to_ptr.vmem [resolvable:$true] %s350
          %356 = dma.hbm_to_vmem [thread:$0]  %s349, 128, %s351, %s339, 64, 64, 4
        $region40: #{tpu_custom_call.1} parent=31 // pred_fallthru
          _
        // Predicated region
        $region41: #{tpu_custom_call.1} parent=31 // pred_check
          %p357 = pneg %p116
        $region42: #{tpu_custom_call.1} parent=31 // pred_check_branch
          %359 = sbr.rel (%p357) target = $region44
        $region43: #{tpu_custom_call.1} parent=31 // pred_region
          %s360 = sand.u32 %s23, 1
          %s361 = scalar_lea.sflag [#allocation7], %s360
          %s362 = sand.u32 %s106, 1
          %s363 = smul.addr %s362, 8
          %s364 = scalar_lea.vmem [#allocation8], %s363
          %366 = vsyncadd %s361, 0
          %s367 = smul.addr %s30, 2
          %s368 = smul.addr %s367, 4
          %s369 = scalar_lea.hbm %s2, %s368
          %s370 = sshll.u32 %s369, 4
          %s371 = int_to_ptr.hbm [resolvable:$true] %s370
          %s372 = sshll.u32 %s364, 4
          %s373 = int_to_ptr.vmem [resolvable:$true] %s372
          %378 = dma.hbm_to_vmem [thread:$0]  %s371, 128, %s373, %s361, 64, 64, 4
        $region44: #{tpu_custom_call.1} parent=31 // pred_fallthru
          _
      $region32: #{tpu_custom_call.1} parent=5 // pred_fallthru
        _
      %p379 = scmp.le.s32.totalorder 1, %s23
      %p380 = scmp.lt.s32.totalorder %s23, 3
      %p381 = pnand %p379, %p380
      %p382 = pneg %p381
      // Predicated region
      $region45: #{tpu_custom_call.1} parent=5 // pred_check
        _
      $region46: #{tpu_custom_call.1} parent=5 // pred_check_branch
        %384 = sbr.rel (%p381) target = $region48
      $region47: #{tpu_custom_call.1} parent=5 // pred_region
        %s385 = ssub.s32 %s23, 1
        %s386 = sand.u32 %s57, 1
        %s387 = scalar_lea.sflag [#allocation4], %s386
        %s388 = sand.u32 %s57, 1
        %s389 = smul.addr %s388, 8
        %s390 = scalar_lea.vmem [#allocation3], %s389
        // Predicated region
        $region49: #{tpu_custom_call.1} parent=47 // pred_check
          %p391 = pneg %p70
        $region50: #{tpu_custom_call.1} parent=47 // pred_check_branch
          %393 = sbr.rel (%p391) target = $region52
        $region51: #{tpu_custom_call.1} parent=47 // pred_region
          %395 = dma.done %s387, 128
        $region52: #{tpu_custom_call.1} parent=47 // pred_fallthru
          _
        %s396 = sand.u32 %s28, 1
        %s397 = scalar_lea.sflag [#allocation7], %s396
        %s398 = sand.u32 %s83, 1
        %s399 = smul.addr %s398, 8
        %s400 = scalar_lea.vmem [#allocation6], %s399
        // Predicated region
        $region53: #{tpu_custom_call.1} parent=47 // pred_check
          %p401 = pneg %p96
        $region54: #{tpu_custom_call.1} parent=47 // pred_check_branch
          %403 = sbr.rel (%p401) target = $region56
        $region55: #{tpu_custom_call.1} parent=47 // pred_region
          %405 = dma.done %s397, 128
        $region56: #{tpu_custom_call.1} parent=47 // pred_fallthru
          _
        %s406 = sand.u32 %s28, 1
        %s407 = scalar_lea.sflag [#allocation7], %s406
        %s408 = sand.u32 %s109, 1
        %s409 = smul.addr %s408, 8
        %s410 = scalar_lea.vmem [#allocation8], %s409
        // Predicated region
        $region57: #{tpu_custom_call.1} parent=47 // pred_check
          %p411 = pneg %p122
        $region58: #{tpu_custom_call.1} parent=47 // pred_check_branch
          %413 = sbr.rel (%p411) target = $region60
        $region59: #{tpu_custom_call.1} parent=47 // pred_region
          %415 = dma.done %s407, 128
        $region60: #{tpu_custom_call.1} parent=47 // pred_fallthru
          _
        // Predicated region
        $region61: #{tpu_custom_call.1} parent=47 // pred_check
          %p416 = pneg %p148
        $region62: #{tpu_custom_call.1} parent=47 // pred_check_branch
          %418 = sbr.rel (%p416) target = $region64
        $region63: #{tpu_custom_call.1} parent=47 // pred_region
          %420 = dma.done [#allocation10], 768
        $region64: #{tpu_custom_call.1} parent=47 // pred_fallthru
          _
        // Predicated region
        $region65: #{tpu_custom_call.1} parent=47 // pred_check
          %p421 = pneg %p200
        $region66: #{tpu_custom_call.1} parent=47 // pred_check_branch
          %423 = sbr.rel (%p421) target = $region68
        $region67: #{tpu_custom_call.1} parent=47 // pred_region
          %425 = dma.done [#allocation10], 256
        $region68: #{tpu_custom_call.1} parent=47 // pred_fallthru
          _
        %s426 = sand.u32 %s57, 1
        %s427 = scalar_lea.sflag [#allocation4], %s426
        %s428 = sand.u32 %s57, 1
        %s429 = smul.addr %s428, 8
        %s430 = scalar_lea.vmem [#allocation3], %s429
        %p431 = pneg %p70
        %p432 = pneg %p67
        %s433 = sand.u32 %s28, 1
        %s434 = scalar_lea.sflag [#allocation7], %s433
        %s435 = sand.u32 %s83, 1
        %s436 = smul.addr %s435, 8
        %s437 = scalar_lea.vmem [#allocation6], %s436
        %p438 = pneg %p96
        %p439 = pneg %p93
        %s440 = sand.u32 %s28, 1
        %s441 = scalar_lea.sflag [#allocation7], %s440
        %s442 = sand.u32 %s109, 1
        %s443 = smul.addr %s442, 8
        %s444 = scalar_lea.vmem [#allocation8], %s443
        %p445 = pneg %p122
        %p446 = pneg %p119
        %p447 = pneg %p148
        %p448 = pneg %p145
        %p449 = scmp.lt.s32.totalorder %s35, 0
        %s450 = scalar_select %p449, %s35, 0
        %s451 = scalar_lea.vmem %s4, %s450
        %p452 = pneg %p174
        %p453 = pneg %p171
        %p454 = pneg %p200
        %p455 = pneg %p197
        %p456 = pneg %p221
        %p457 = pneg %p218
        %p458 = pneg %p249
        %p459 = pneg %p246
        %s460 = sand.u32 %s236, 1
        %s461 = scalar_lea.sflag [#allocation5], %s460
        %s462 = sand.u32 %s236, 1
        %s463 = smul.addr %s462, 16
        %s464 = scalar_lea.vmem [#allocation12], %s463
        %s465 = smul.u32 2, %s34
        %p466 = scmp.lt.s32.totalorder %s35, 0
        %s467 = scalar_select %p466, %s35, 0
        %s468 = scalar_lea.vmem %s4, %s467
        %s469 = smul.u32 2, %s34
        %p471 = scmp.eq.s32.totalorder %s35, 0
        // Predicated region
        $region69: #{tpu_custom_call.1} parent=47 // pred_check
          %p472 = pneg %p471
        $region70: #{tpu_custom_call.1} parent=47 // pred_check_branch
          %474 = sbr.rel (%p472) target = $region72
        $region71: #{tpu_custom_call.1} parent=47 // pred_region
          %v475 = vld [vmem:[%s6] sm:$0x1]
          %v477 = vperm.slane %v475, 0
          %vm479 = vcmask 261120
          %480 = vst.msk [vmem:[#allocation2] sm:$0xff] %vm479, %v477
          %481 = vst.msk [vmem:[#allocation2 + $0x8] sm:$0xff] %vm479, %v477
        $region72: #{tpu_custom_call.1} parent=47 // pred_fallthru
          _
        %v482 = vld [vmem:[%s390] sm:$0xf]
        %v483 = vld [vmem:[%s390 + $0x4] sm:$0xf]
        %v484 = vld [vmem:[%s400] sm:$0xf]
        %v485 = vld [vmem:[%s400 + $0x4] sm:$0xf]
        %v486 = vld [vmem:[%s410] sm:$0xf]
        %v487 = vld [vmem:[%s410 + $0x4] sm:$0xf]
        %v488 = vld [vmem:[#allocation9] sm:$0xf]
        %v489 = vld [vmem:[#allocation9 + $0x4] sm:$0xf]
        %v490 = vld [vmem:[#allocation9 + $0x8] sm:$0xf]
        %v491 = vld [vmem:[#allocation9 + $0xc] sm:$0xf]
        %v492 = vld [vmem:[%s468] sm:$0x1]
        %v494 = vperm.slane %v492, 0
        %v498 = vunpack.c.l.b16 %v482
        %v499 = vunpack.c.l.b16 %v483
        %v500 = vpack.c.b16 %v499, %v498
        %v505 = vunpack.c.l.b16 %v488
        %v506 = vunpack.c.l.b16 %v489
        %v507 = vunpack.c.l.b16 %v490
        %v508 = vunpack.c.l.b16 %v491
        %v509 = vpack.c.b16 %v506, %v505
        %v510 = vpack.c.b16 %v508, %v507
        %vm513 = vcmask 261120
        %v515 = vsel %vm513, %v500, 0
        %517 = vmatpush.bf16.msra.mxu0 0
        %518 = vmatpush.bf16.msra.mxu0 0
        %519 = vmatpush.bf16.msra.mxu0 0
        %520 = vmatpush.bf16.msra.mxu0 0
        %521 = vmatpush.bf16.msra.mxu0 0
        %522 = vmatpush.bf16.msra.mxu0 0
        %523 = vmatpush.bf16.msra.mxu0 %v510
        %524 = vmatpush.bf16.msra.mxu0 %v509
        %525 = vmatmul.bf16.gmra.mxu0 %v515
        %v526 = vpop.f32.mrf.mxu0
        %v527 = vadd.f32 %v494, %v526
        %v528 = vpop.f32.mrf.mxu0
        %v529 = vadd.f32 %v494, %v528
        %530 = vdwg.mxu0
        %v531 = vpack.c.bf16 %v527, %v527
        %v532 = vpack.c.bf16 %v529, %v529
        %s533 = scalar_lea.vmem [#allocation9], 16
        %v534 = vld [vmem:[%s533] sm:$0xf]
        %v535 = vld [vmem:[%s533 + $0x4] sm:$0xf]
        %v536 = vld [vmem:[%s533 + $0x8] sm:$0xf]
        %v537 = vld [vmem:[%s533 + $0xc] sm:$0xf]
        %s538 = scalar_lea.vmem %s468, 1
        %v539 = vld [vmem:[%s538] sm:$0x1]
        %v541 = vperm.slane %v539, 0
        %v545 = vunpack.c.l.b16 %v484
        %v546 = vunpack.c.l.b16 %v485
        %v547 = vpack.c.b16 %v546, %v545
        %v552 = vunpack.c.l.b16 %v534
        %v553 = vunpack.c.l.b16 %v535
        %v554 = vunpack.c.l.b16 %v536
        %v555 = vunpack.c.l.b16 %v537
        %v556 = vpack.c.b16 %v553, %v552
        %v557 = vpack.c.b16 %v555, %v554
        %v561 = vsel %vm513, %v547, 0
        %563 = vmatpush.bf16.msra.mxu0 0
        %564 = vmatpush.bf16.msra.mxu0 0
        %565 = vmatpush.bf16.msra.mxu0 0
        %566 = vmatpush.bf16.msra.mxu0 0
        %567 = vmatpush.bf16.msra.mxu0 0
        %568 = vmatpush.bf16.msra.mxu0 0
        %569 = vmatpush.bf16.msra.mxu0 %v557
        %570 = vmatpush.bf16.msra.mxu0 %v556
        %571 = vmatmul.bf16.gmra.mxu0 %v561
        %v572 = vpop.f32.mrf.mxu0
        %v573 = vadd.f32 %v541, %v572
        %v574 = vpop.f32.mrf.mxu0
        %v575 = vadd.f32 %v541, %v574
        %576 = vdwg.mxu0
        %v577 = vpack.c.bf16 %v573, %v573
        %v578 = vpack.c.bf16 %v575, %v575
        %s579 = scalar_lea.vmem [#allocation9], 32
        %v580 = vld [vmem:[%s579] sm:$0xf]
        %v581 = vld [vmem:[%s579 + $0x4] sm:$0xf]
        %v582 = vld [vmem:[%s579 + $0x8] sm:$0xf]
        %v583 = vld [vmem:[%s579 + $0xc] sm:$0xf]
        %s584 = scalar_lea.vmem %s468, 2
        %v585 = vld [vmem:[%s584] sm:$0x1]
        %v587 = vperm.slane %v585, 0
        %v591 = vunpack.c.l.b16 %v486
        %v592 = vunpack.c.l.b16 %v487
        %v593 = vpack.c.b16 %v592, %v591
        %v598 = vunpack.c.l.b16 %v580
        %v599 = vunpack.c.l.b16 %v581
        %v600 = vunpack.c.l.b16 %v582
        %v601 = vunpack.c.l.b16 %v583
        %v602 = vpack.c.b16 %v599, %v598
        %v603 = vpack.c.b16 %v601, %v600
        %v607 = vsel %vm513, %v593, 0
        %609 = vmatpush.bf16.msra.mxu0 0
        %610 = vmatpush.bf16.msra.mxu0 0
        %611 = vmatpush.bf16.msra.mxu0 0
        %612 = vmatpush.bf16.msra.mxu0 0
        %613 = vmatpush.bf16.msra.mxu0 0
        %614 = vmatpush.bf16.msra.mxu0 0
        %615 = vmatpush.bf16.msra.mxu0 %v603
        %616 = vmatpush.bf16.msra.mxu0 %v602
        %617 = vmatmul.bf16.gmra.mxu0 %v607
        %v618 = vpop.f32.mrf.mxu0
        %v619 = vadd.f32 %v587, %v618
        %v620 = vpop.f32.mrf.mxu0
        %v621 = vadd.f32 %v587, %v620
        %622 = vdwg.mxu0
        %v623 = vpack.c.bf16 %v619, %v619
        %v624 = vpack.c.bf16 %v621, %v621
        %v627 = vunpack.c.l.b16 %v531
        %v628 = vunpack.c.l.b16 %v532
        %v629 = vpack.c.b16 %v628, %v627
        %v632 = vunpack.c.l.b16 %v577
        %v633 = vunpack.c.l.b16 %v578
        %v634 = vpack.c.b16 %v633, %v632
        %vm635 = vcmask 64512
        %v637 = vsel %vm635, %v629, 0
        %v640 = vsel %vm635, %v634, 0
        %642 = vmatpush.bf16.xpose.msra.mxu0 0
        %643 = vmatpush.bf16.xpose.msra.mxu0 0
        %644 = vmatpush.bf16.xpose.msra.mxu0 0
        %645 = vmatpush.bf16.xpose.msra.mxu0 0
        %646 = vmatpush.bf16.xpose.msra.mxu0 0
        %647 = vmatpush.bf16.xpose.msra.mxu0 0
        %648 = vmatpush.bf16.xpose.msra.mxu0 0
        %649 = vmatpush.bf16.xpose.msra.mxu0 %v640
        %650 = vmatmul.bf16.gmra.mxu0 %v637
        %v651 = vpop.f32.mrf.mxu0
        %v652 = vadd.f32 0.0, %v651
        %v653 = vpop.f32.mrf.mxu0
        %v654 = vadd.f32 0.0, %v653
        %655 = vdwg.mxu0
        %vm656 = vcmask 130048
        %v657 = vsel %vm656, %v652, -inf
        %658 = vmax.xlane.f32.xlu0 %v657
        %v659 = vpop.xlane.xlu0 %658
        %v660 = vsel %vm656, %v654, -inf
        %661 = vmax.xlane.f32.xlu0 %v660
        %v662 = vpop.xlane.xlu0 %661
        %v663 = vsub.f32 %v652, %v659
        %v664 = vsub.f32 %v654, %v662
        %v665 = vmul.f32 %v663, 1.442695
        %v666 = vpow.pop %v665
        %v667 = vmul.f32 %v664, 1.442695
        %v668 = vpow.pop %v667
        %v669 = vsel %vm656, %v666, 0.0
        %670 = vadd.xlane.f32.xlu0 %v669
        %v671 = vpop.xlane.xlu0 %670
        %v672 = vsel %vm656, %v668, 0.0
        %673 = vadd.xlane.f32.xlu0 %v672
        %v674 = vpop.xlane.xlu0 %673
        %v675 = vrcp.pop %v671
        %v676 = vrcp.pop %v674
        %v677 = vmul.f32 %v666, %v675
        %v678 = vmul.f32 %v668, %v676
        %v679 = vpack.c.bf16 %v678, %v677
        %v682 = vunpack.c.l.b16 %v623
        %v683 = vunpack.c.l.b16 %v624
        %v684 = vpack.c.b16 %v683, %v682
        %v687 = vsel %vm656, %v679, 0
        %689 = vmatpush.bf16.msra.mxu0 0
        %690 = vmatpush.bf16.msra.mxu0 0
        %691 = vmatpush.bf16.msra.mxu0 0
        %692 = vmatpush.bf16.msra.mxu0 0
        %693 = vmatpush.bf16.msra.mxu0 0
        %694 = vmatpush.bf16.msra.mxu0 0
        %695 = vmatpush.bf16.msra.mxu0 0
        %696 = vmatpush.bf16.msra.mxu0 %v684
        %697 = vmatmul.bf16.gmra.mxu0 %v687
        %v698 = vpop.f32.mrf.mxu0
        %v699 = vadd.f32 0.0, %v698
        %v700 = vpop.f32.mrf.mxu0
        %v701 = vadd.f32 0.0, %v700
        %702 = vdwg.mxu0
        %703 = vrot.lane.b32.xlu0 %v629, 120
        %v704 = vpop.permute.xlu0 %703
        %705 = vrot.lane.b32.xlu0 %v634, 120
        %v706 = vpop.permute.xlu0 %705
        %v708 = vsel %vm635, %v704, 0
        %v711 = vsel %vm635, %v706, 0
        %713 = vmatpush.bf16.xpose.msra.mxu0 0
        %714 = vmatpush.bf16.xpose.msra.mxu0 0
        %715 = vmatpush.bf16.xpose.msra.mxu0 0
        %716 = vmatpush.bf16.xpose.msra.mxu0 0
        %717 = vmatpush.bf16.xpose.msra.mxu0 0
        %718 = vmatpush.bf16.xpose.msra.mxu0 0
        %719 = vmatpush.bf16.xpose.msra.mxu0 0
        %720 = vmatpush.bf16.xpose.msra.mxu0 %v711
        %721 = vmatmul.bf16.gmra.mxu0 %v708
        %v722 = vpop.f32.mrf.mxu0
        %v723 = vadd.f32 0.0, %v722
        %v724 = vpop.f32.mrf.mxu0
        %v725 = vadd.f32 0.0, %v724
        %726 = vdwg.mxu0
        %v727 = vsel %vm656, %v723, -inf
        %728 = vmax.xlane.f32.xlu0 %v727
        %v729 = vpop.xlane.xlu0 %728
        %v730 = vsel %vm656, %v725, -inf
        %731 = vmax.xlane.f32.xlu0 %v730
        %v732 = vpop.xlane.xlu0 %731
        %v733 = vsub.f32 %v723, %v729
        %v734 = vsub.f32 %v725, %v732
        %v735 = vmul.f32 %v733, 1.442695
        %v736 = vpow.pop %v735
        %v737 = vmul.f32 %v734, 1.442695
        %v738 = vpow.pop %v737
        %v739 = vsel %vm656, %v736, 0.0
        %740 = vadd.xlane.f32.xlu0 %v739
        %v741 = vpop.xlane.xlu0 %740
        %v742 = vsel %vm656, %v738, 0.0
        %743 = vadd.xlane.f32.xlu0 %v742
        %v744 = vpop.xlane.xlu0 %743
        %v745 = vrcp.pop %v741
        %v746 = vrcp.pop %v744
        %v747 = vmul.f32 %v736, %v745
        %v748 = vmul.f32 %v738, %v746
        %v749 = vpack.c.bf16 %v748, %v747
        %750 = vrot.lane.b32.xlu0 %v684, 120
        %v751 = vpop.permute.xlu0 %750
        %v754 = vsel %vm656, %v749, 0
        %756 = vmatpush.bf16.msra.mxu0 0
        %757 = vmatpush.bf16.msra.mxu0 0
        %758 = vmatpush.bf16.msra.mxu0 0
        %759 = vmatpush.bf16.msra.mxu0 0
        %760 = vmatpush.bf16.msra.mxu0 0
        %761 = vmatpush.bf16.msra.mxu0 0
        %762 = vmatpush.bf16.msra.mxu0 0
        %763 = vmatpush.bf16.msra.mxu0 %v751
        %764 = vmatmul.bf16.gmra.mxu0 %v754
        %v765 = vpop.f32.mrf.mxu0
        %v766 = vadd.f32 0.0, %v765
        %v767 = vpop.f32.mrf.mxu0
        %v768 = vadd.f32 0.0, %v767
        %769 = vdwg.mxu0
        %770 = vrot.lane.b32.xlu0 %v629, 112
        %v771 = vpop.permute.xlu0 %770
        %772 = vrot.lane.b32.xlu0 %v634, 112
        %v773 = vpop.permute.xlu0 %772
        %v775 = vsel %vm635, %v771, 0
        %v778 = vsel %vm635, %v773, 0
        %780 = vmatpush.bf16.xpose.msra.mxu0 0
        %781 = vmatpush.bf16.xpose.msra.mxu0 0
        %782 = vmatpush.bf16.xpose.msra.mxu0 0
        %783 = vmatpush.bf16.xpose.msra.mxu0 0
        %784 = vmatpush.bf16.xpose.msra.mxu0 0
        %785 = vmatpush.bf16.xpose.msra.mxu0 0
        %786 = vmatpush.bf16.xpose.msra.mxu0 0
        %787 = vmatpush.bf16.xpose.msra.mxu0 %v778
        %788 = vmatmul.bf16.gmra.mxu0 %v775
        %v789 = vpop.f32.mrf.mxu0
        %v790 = vadd.f32 0.0, %v789
        %v791 = vpop.f32.mrf.mxu0
        %v792 = vadd.f32 0.0, %v791
        %793 = vdwg.mxu0
        %v794 = vsel %vm656, %v790, -inf
        %795 = vmax.xlane.f32.xlu0 %v794
        %v796 = vpop.xlane.xlu0 %795
        %v797 = vsel %vm656, %v792, -inf
        %798 = vmax.xlane.f32.xlu0 %v797
        %v799 = vpop.xlane.xlu0 %798
        %v800 = vsub.f32 %v790, %v796
        %v801 = vsub.f32 %v792, %v799
        %v802 = vmul.f32 %v800, 1.442695
        %v803 = vpow.pop %v802
        %v804 = vmul.f32 %v801, 1.442695
        %v805 = vpow.pop %v804
        %v806 = vsel %vm656, %v803, 0.0
        %807 = vadd.xlane.f32.xlu0 %v806
        %v808 = vpop.xlane.xlu0 %807
        %v809 = vsel %vm656, %v805, 0.0
        %810 = vadd.xlane.f32.xlu0 %v809
        %v811 = vpop.xlane.xlu0 %810
        %v812 = vrcp.pop %v808
        %v813 = vrcp.pop %v811
        %v814 = vmul.f32 %v803, %v812
        %v815 = vmul.f32 %v805, %v813
        %v816 = vpack.c.bf16 %v815, %v814
        %817 = vrot.lane.b32.xlu0 %v684, 112
        %v818 = vpop.permute.xlu0 %817
        %v821 = vsel %vm656, %v816, 0
        %823 = vmatpush.bf16.msra.mxu0 0
        %824 = vmatpush.bf16.msra.mxu0 0
        %825 = vmatpush.bf16.msra.mxu0 0
        %826 = vmatpush.bf16.msra.mxu0 0
        %827 = vmatpush.bf16.msra.mxu0 0
        %828 = vmatpush.bf16.msra.mxu0 0
        %829 = vmatpush.bf16.msra.mxu0 0
        %830 = vmatpush.bf16.msra.mxu0 %v818
        %831 = vmatmul.bf16.gmra.mxu0 %v821
        %v832 = vpop.f32.mrf.mxu0
        %v833 = vadd.f32 0.0, %v832
        %v834 = vpop.f32.mrf.mxu0
        %v835 = vadd.f32 0.0, %v834
        %836 = vdwg.mxu0
        %837 = vrot.lane.b32.xlu0 %v629, 104
        %v838 = vpop.permute.xlu0 %837
        %839 = vrot.lane.b32.xlu0 %v634, 104
        %v840 = vpop.permute.xlu0 %839
        %v842 = vsel %vm635, %v838, 0
        %v845 = vsel %vm635, %v840, 0
        %847 = vmatpush.bf16.xpose.msra.mxu0 0
        %848 = vmatpush.bf16.xpose.msra.mxu0 0
        %849 = vmatpush.bf16.xpose.msra.mxu0 0
        %850 = vmatpush.bf16.xpose.msra.mxu0 0
        %851 = vmatpush.bf16.xpose.msra.mxu0 0
        %852 = vmatpush.bf16.xpose.msra.mxu0 0
        %853 = vmatpush.bf16.xpose.msra.mxu0 0
        %854 = vmatpush.bf16.xpose.msra.mxu0 %v845
        %855 = vmatmul.bf16.gmra.mxu0 %v842
        %v856 = vpop.f32.mrf.mxu0
        %v857 = vadd.f32 0.0, %v856
        %v858 = vpop.f32.mrf.mxu0
        %v859 = vadd.f32 0.0, %v858
        %860 = vdwg.mxu0
        %v861 = vsel %vm656, %v857, -inf
        %862 = vmax.xlane.f32.xlu0 %v861
        %v863 = vpop.xlane.xlu0 %862
        %v864 = vsel %vm656, %v859, -inf
        %865 = vmax.xlane.f32.xlu0 %v864
        %v866 = vpop.xlane.xlu0 %865
        %v867 = vsub.f32 %v857, %v863
        %v868 = vsub.f32 %v859, %v866
        %v869 = vmul.f32 %v867, 1.442695
        %v870 = vpow.pop %v869
        %v871 = vmul.f32 %v868, 1.442695
        %v872 = vpow.pop %v871
        %v873 = vsel %vm656, %v870, 0.0
        %874 = vadd.xlane.f32.xlu0 %v873
        %v875 = vpop.xlane.xlu0 %874
        %v876 = vsel %vm656, %v872, 0.0
        %877 = vadd.xlane.f32.xlu0 %v876
        %v878 = vpop.xlane.xlu0 %877
        %v879 = vrcp.pop %v875
        %v880 = vrcp.pop %v878
        %v881 = vmul.f32 %v870, %v879
        %v882 = vmul.f32 %v872, %v880
        %v883 = vpack.c.bf16 %v882, %v881
        %884 = vrot.lane.b32.xlu0 %v684, 104
        %v885 = vpop.permute.xlu0 %884
        %v888 = vsel %vm656, %v883, 0
        %890 = vmatpush.bf16.msra.mxu0 0
        %891 = vmatpush.bf16.msra.mxu0 0
        %892 = vmatpush.bf16.msra.mxu0 0
        %893 = vmatpush.bf16.msra.mxu0 0
        %894 = vmatpush.bf16.msra.mxu0 0
        %895 = vmatpush.bf16.msra.mxu0 0
        %896 = vmatpush.bf16.msra.mxu0 0
        %897 = vmatpush.bf16.msra.mxu0 %v885
        %898 = vmatmul.bf16.gmra.mxu0 %v888
        %v899 = vpop.f32.mrf.mxu0
        %v900 = vadd.f32 0.0, %v899
        %v901 = vpop.f32.mrf.mxu0
        %v902 = vadd.f32 0.0, %v901
        %903 = vdwg.mxu0
        %906 = vrot.lane.b32.xlu0 %v766, 8
        %v907 = vpop.permute.xlu0 %906
        %908 = vrot.lane.b32.xlu0 %v768, 8
        %v909 = vpop.permute.xlu0 %908
        %914 = vrot.lane.b32.xlu0 %v833, 16
        %v915 = vpop.permute.xlu0 %914
        %916 = vrot.lane.b32.xlu0 %v835, 16
        %v917 = vpop.permute.xlu0 %916
        %922 = vrot.lane.b32.xlu0 %v900, 24
        %v923 = vpop.permute.xlu0 %922
        %924 = vrot.lane.b32.xlu0 %v902, 24
        %v925 = vpop.permute.xlu0 %924
        %v928 = vsel %vm635, %v699, %v907
        %v929 = vsel %vm635, %v701, %v909
        %v930 = vsel %vm656, %v928, %v915
        %v931 = vsel %vm656, %v929, %v917
        %vm932 = vcmask 195584
        %v933 = vsel %vm932, %v930, %v923
        %v934 = vsel %vm932, %v931, %v925
        %v935 = vpack.c.bf16 %v934, %v933
        %v936 = vld [vmem:[#allocation2] sm:$0xff]
        %v937 = vld [vmem:[#allocation2 + $0x8] sm:$0xff]
        %v938 = vld [vmem:[#allocation11] sm:$0xf]
        %v939 = vld [vmem:[#allocation11 + $0x4] sm:$0xf]
        %v940 = vld [vmem:[#allocation11 + $0x8] sm:$0xf]
        %v941 = vld [vmem:[#allocation11 + $0xc] sm:$0xf]
        %v946 = vunpack.c.l.b16 %v938
        %v947 = vunpack.c.l.b16 %v939
        %v948 = vunpack.c.l.b16 %v940
        %v949 = vunpack.c.l.b16 %v941
        %v950 = vpack.c.b16 %v947, %v946
        %v951 = vpack.c.b16 %v949, %v948
        %v955 = vsel %vm513, %v935, 0
        %957 = vmatpush.bf16.msra.mxu0 0
        %958 = vmatpush.bf16.msra.mxu0 0
        %959 = vmatpush.bf16.msra.mxu0 0
        %960 = vmatpush.bf16.msra.mxu0 0
        %961 = vmatpush.bf16.msra.mxu0 0
        %962 = vmatpush.bf16.msra.mxu0 0
        %963 = vmatpush.bf16.msra.mxu0 %v951
        %964 = vmatpush.bf16.msra.mxu0 %v950
        %965 = vmatmul.bf16.gmra.mxu0 %v955
        %v966 = vpop.f32.mrf.mxu0
        %v967 = vadd.f32 0.0, %v966
        %v968 = vpop.f32.mrf.mxu0
        %v969 = vadd.f32 0.0, %v968
        %970 = vdwg.mxu0
        %v971 = vadd.f32 %v936, %v967
        %v972 = vadd.f32 %v937, %v969
        %973 = vst.msk [vmem:[#allocation2] sm:$0xff] %vm513, %v971
        %974 = vst.msk [vmem:[#allocation2 + $0x8] sm:$0xff] %vm513, %v972
        // Predicated region
        $region73: #{tpu_custom_call.1} parent=47 // pred_check
          %p975 = pneg %p471
        $region74: #{tpu_custom_call.1} parent=47 // pred_check_branch
          %977 = sbr.rel (%p975) target = $region76
        $region75: #{tpu_custom_call.1} parent=47 // pred_region
          %v978 = vld [vmem:[#allocation2] sm:$0xff]
          %v979 = vld [vmem:[#allocation2 + $0x8] sm:$0xff]
          %980 = vst.msk [vmem:[%s464] sm:$0xff] %vm513, %v978
          %981 = vst.msk [vmem:[%s464 + $0x8] sm:$0xff] %vm513, %v979
        $region76: #{tpu_custom_call.1} parent=47 // pred_fallthru
          _
        %s982 = sand.u32 %s236, 1
        %s983 = scalar_lea.sflag [#allocation5], %s982
        %s984 = sand.u32 %s236, 1
        %s985 = smul.addr %s984, 16
        %s986 = scalar_lea.vmem [#allocation12], %s985
        // Predicated region
        $region77: #{tpu_custom_call.1} parent=47 // pred_check
          %p987 = pneg %p246
        $region78: #{tpu_custom_call.1} parent=47 // pred_check_branch
          %989 = sbr.rel (%p987) target = $region80
        $region79: #{tpu_custom_call.1} parent=47 // pred_region
          %s990 = smul.u32 2, %s34
          %992 = vsyncadd %s983, 0
          %s993 = smul.addr %s33, 2
          %s994 = sadd.s32 %s990, %s993
          %s995 = smul.addr %s994, 8
          %s996 = scalar_lea.hbm %s7, %s995
          %s997 = sshll.u32 %s986, 4
          %s998 = int_to_ptr.vmem [resolvable:$true] %s997
          %s999 = sshll.u32 %s996, 4
          %s1000 = int_to_ptr.hbm [resolvable:$true] %s999
          %1005 = dma.vmem_to_hbm [thread:$0]  %s998, 256, %s1000, %s983, 128, 128, 8
        $region80: #{tpu_custom_call.1} parent=47 // pred_fallthru
          _
      $region48: #{tpu_custom_call.1} parent=5 // pred_fallthru
        _
      %p1006 = scmp.le.s32.totalorder 2, %s23
      // Predicated region
      $region81: #{tpu_custom_call.1} parent=5 // pred_check
        %p1007 = pneg %p1006
      $region82: #{tpu_custom_call.1} parent=5 // pred_check_branch
        %1009 = sbr.rel (%p1007) target = $region84
      $region83: #{tpu_custom_call.1} parent=5 // pred_region
        %s1010 = ssub.s32 %s23, 2
        // Predicated region
        $region85: #{tpu_custom_call.1} parent=83 // pred_check
          %p1011 = pneg %p252
        $region86: #{tpu_custom_call.1} parent=83 // pred_check_branch
          %1013 = sbr.rel (%p1011) target = $region88
        $region87: #{tpu_custom_call.1} parent=83 // pred_region
          %s1014 = sand.u32 %s237, 1
          %s1015 = scalar_lea.sflag [#allocation5], %s1014
          %s1016 = sand.u32 %s237, 1
          %s1017 = smul.addr %s1016, 16
          %s1018 = scalar_lea.vmem [#allocation12], %s1017
          %1020 = dma.done %s1015, 256
        $region88: #{tpu_custom_call.1} parent=83 // pred_fallthru
          _
      $region84: #{tpu_custom_call.1} parent=5 // pred_fallthru
        _
    $region6: #{tpu_custom_call.1} parent=1 // loop_footer
      %s27 = sadd.s32 1, %s23
    $region7: #{tpu_custom_call.1} parent=1 // loop_footer_branch
      %22 = sbr.rel target = $region3
    $region8: #{tpu_custom_call.1} parent=1 // loop_exit
      _
    %1021 = vsyncpa [#allocation4], 1
    %s1022 = scalar_lea.sflag [#allocation4], 1
    %1023 = vsyncpa %s1022, 1
    %1024 = vsyncpa [#allocation7], 1
    %s1025 = scalar_lea.sflag [#allocation7], 1
    %1026 = vsyncpa %s1025, 1
    %1027 = vsyncpa [#allocation10], 1
    %1028 = vsyncpa [#allocation5], 1
    %s1029 = scalar_lea.sflag [#allocation5], 1
    %1030 = vsyncpa %s1029, 1

</llo_original>
